<compile_context>
chip_gen: v7x
topology: tpu7x:2x2x1
jax: 0.10.0
libtpu: 0.0.40
codegen_flags: <defaults>
</compile_context>

<pallas_src>
import math

import jax
import jax.numpy as jnp
from jax.experimental import pallas as pl
from jax.experimental.pallas import tpu as pltpu


def _round_up(x, m):
    return (x + m - 1) // m * m


def _make_gwap_pool_kernel(hw_tile, num_k, tail_len, lane_groups):
    """Row-wise GWAP pooling: pooled[r] = sum_j s*x - log(sum_j exp(s)) * sum_j x."""
    ragged = tail_len != hw_tile          # last spatial block only partially valid
    EXP_HALF = math.exp(0.5)
    # Taylor coefficients for exp(u), |u| < 0.5 (degree 7, rel. err ~1e-7).
    C2, C3, C4, C5, C6, C7 = (1 / 2.0, 1 / 6.0, 1 / 24.0, 1 / 120.0,
                              1 / 720.0, 1 / 5040.0)

    def kernel(x_ref, o_ref, acc_exp, acc_sx, acc_x):
        # x_ref : (ROW_TILE, HW_TILE)       rows = flattened (N*C), lanes = spatial
        # o_ref : (ROW_TILE, 1)             pooled value per row
        # acc_* : (ROW_TILE, 1 or 128) f32  running (per-lane) sums across k axis
        k = pl.program_id(1)

        @pl.when(k == 0)
        def _():
            acc_exp[...] = jnp.zeros_like(acc_exp)
            acc_sx[...] = jnp.zeros_like(acc_sx)
            acc_x[...] = jnp.zeros_like(acc_x)

        xv = x_ref[...].astype(jnp.float32)
        # sigmoid via tanh: 1 EUP op instead of exp + reciprocal.
        t = jnp.tanh(0.5 * xv)
        s = 0.5 + 0.5 * t
        # exp(s) = e^{1/2} * exp(u), u = t/2 in (-1/2, 1/2): polynomial on the VPU,
        # so the only EUP op per element is the tanh above.
        u = 0.5 * t
        p = 1.0 + u * (1.0 + u * (C2 + u * (C3 + u * (C4 + u * (C5 + u * (C6 + u * C7))))))
        es = EXP_HALF * p
        sx = s * xv

        def accumulate(es_, sx_, x_):
            if lane_groups is None:
                # Spatial extent not a multiple of 128 (single-block case only):
                # plain cross-lane reductions into (rt, 1) accumulators.
                acc_exp[...] += jnp.sum(es_, axis=-1, keepdims=True)
                acc_sx[...] += jnp.sum(sx_, axis=-1, keepdims=True)
                acc_x[...] += jnp.sum(x_, axis=-1, keepdims=True)
            else:
                # Lane-dense partial sums: 128-aligned static slices are free
                # views, accumulation is pure vreg adds (no XLU per step).
                pe = es_[:, 0:128]
                ps = sx_[:, 0:128]
                px = x_[:, 0:128]
                for j in range(1, lane_groups):
                    lo, hi = j * 128, (j + 1) * 128
                    pe = pe + es_[:, lo:hi]
                    ps = ps + sx_[:, lo:hi]
                    px = px + x_[:, lo:hi]
                acc_exp[...] += pe
                acc_sx[...] += ps
                acc_x[...] += px

        if ragged:
            # Unmasked fast path for all but the last spatial block; the OOB
            # lanes of the last block (undefined data) are masked before they
            # can reach any accumulator.
            @pl.when(k < num_k - 1)
            def _():
                accumulate(es, sx, xv)

            @pl.when(k == num_k - 1)
            def _():
                valid = jax.lax.broadcasted_iota(jnp.int32, xv.shape, 1) < tail_len
                zero = jnp.zeros_like(xv)
                accumulate(jnp.where(valid, es, zero),
                           jnp.where(valid, sx, zero),
                           jnp.where(valid, xv, zero))
        else:
            accumulate(es, sx, xv)

        @pl.when(k == num_k - 1)
        def _():
            if lane_groups is None:
                tot_e, tot_sx, tot_x = acc_exp[...], acc_sx[...], acc_x[...]
            else:
                # Single cross-lane (XLU) reduce of the three accumulators.
                tot_e = jnp.sum(acc_exp[...], axis=-1, keepdims=True)
                tot_sx = jnp.sum(acc_sx[...], axis=-1, keepdims=True)
                tot_x = jnp.sum(acc_x[...], axis=-1, keepdims=True)
            # s in (0,1) => exp(s) in (1,e): logsumexp is safe without max-shift.
            o_ref[...] = (tot_sx - jnp.log(tot_e) * tot_x).astype(o_ref.dtype)

    return kernel


def gwap_forward(x, linear_w, linear_b, *, row_tile=256, hw_tile_max=None,
                 target_block_bytes=8 * 1024 * 1024):
    """x: (N, C, H, W) f32 or bf16; linear_w: (K, C); linear_b: (K,). Returns (N, K)."""
    N, C, H, W = x.shape
    R = N * C
    HW = H * W
    x2 = x.reshape(R, HW)
    itemsize = jnp.dtype(x.dtype).itemsize

    # Row tile: collapse (N, C) onto the sublane axis, multiple of 8. Aim for
    # >= 2 row blocks when R allows so v7x's two TensorCores both get work.
    rt = min(row_tile, _round_up(R, 8))
    while pl.cdiv(R, rt) < 2 and rt > 8:
        rt = max(8, _round_up(rt // 2, 8))

    # Spatial tile: budget lanes so one input block is ~target_block_bytes
    # (grows when rt is tiny instead of shrinking the block).
    budget = max(128, (target_block_bytes // (rt * itemsize)) // 128 * 128)
    cap = budget if hw_tile_max is None else hw_tile_max

    if HW <= cap:
        hw_tile = HW                      # full-extent block: always layout-legal
    else:
        cap128 = max(128, (cap // 128) * 128)
        # Prefer a 128-multiple that divides HW (avoids the masked tail block
        # entirely), but don't shrink the block below half the cap for it.
        hw_tile = cap128
        c = cap128
        while c >= max(128, cap128 // 2):
            if HW % c == 0:
                hw_tile = c
                break
            c -= 128

    num_r = pl.cdiv(R, rt)
    num_k = pl.cdiv(HW, hw_tile)
    tail_len = HW - (num_k - 1) * hw_tile          # == hw_tile when evenly divided
    lane_groups = hw_tile // 128 if hw_tile % 128 == 0 else None
    acc_lanes = 128 if lane_groups is not None else 1

    # VMEM: double-buffered input block + tiny accumulators/output. Keep under
    # 48 MiB so a v6e-tuned config can't blow v7x's 64 MiB physical VMEM.
    in_block_bytes = rt * hw_tile * itemsize
    vmem_limit = int(min(48 * 1024 * 1024,
                         max(32 * 1024 * 1024, 2 * in_block_bytes + (8 << 20))))

    kernel = _make_gwap_pool_kernel(hw_tile, num_k, tail_len, lane_groups)

    pooled = pl.pallas_call(
        kernel,
        out_shape=jax.ShapeDtypeStruct((R, 1), jnp.float32),
        grid_spec=pltpu.PrefetchScalarGridSpec(
            num_scalar_prefetch=0,
            grid=(num_r, num_k),                    # reduction axis last
            in_specs=[pl.BlockSpec((rt, hw_tile), lambda r, k: (r, k))],
            out_specs=pl.BlockSpec((rt, 1), lambda r, k: (r, 0)),
            scratch_shapes=[pltpu.VMEM((rt, acc_lanes), jnp.float32)] * 3,
        ),
        compiler_params=pltpu.CompilerParams(
            dimension_semantics=("parallel", "arbitrary"),
            vmem_limit_bytes=vmem_limit,
        ),
    )(x2)

    pooled = pooled[:, 0].reshape(N, C)
    # Tiny (N,C)@(C,K) Linear head in XLA (not worth an in-kernel MXU op).
    return pooled @ linear_w.T + linear_b


def gwap_reference(x, linear_w, linear_b):
    s = jax.nn.sigmoid(x)
    lse = jax.scipy.special.logsumexp(s, axis=(2, 3), keepdims=True)
    pooled = jnp.sum((s - lse) * x, axis=(2, 3))
    return pooled @ linear_w.T + linear_b


if __name__ == "__main__":
    N, C, H, W = 2, 4, 16, 16        # batch, features, spatial
    K = 8                            # num_classes

    key = jax.random.PRNGKey(0)
    kx, kx2, kx3, kcw, kcb, klw, klb = jax.random.split(key, 7)

    x = jax.random.normal(kx, (N, C, H, W), dtype=jnp.float32)

    # nn.Conv2d(features, 1, kernel_size=1, bias=True): params exist in the
    # module but forward() discards the conv output, so it cannot affect the
    # result — params created for fidelity only, dead compute skipped.
    conv_w = jax.random.normal(kcw, (1, C, 1, 1), dtype=jnp.float32) * 0.1
    conv_b = jax.random.normal(kcb, (1,), dtype=jnp.float32) * 0.1

    # nn.Linear(features, num_classes)
    linear_w = jax.random.normal(klw, (K, C), dtype=jnp.float32) * 0.1
    linear_b = jax.random.normal(klb, (K,), dtype=jnp.float32) * 0.1

    # 1) Default path: single full-extent spatial block, lane-dense accumulators.
    logits = gwap_forward(x, linear_w, linear_b)
    jax.block_until_ready(logits)
    ref = gwap_reference(x, linear_w, linear_b)
    assert logits.shape == (N, K)
    assert jnp.allclose(logits, ref, atol=2e-4, rtol=2e-4)

    # 2) Multi-block spatial reduction, evenly divided (no masked tail).
    logits2 = gwap_forward(x, linear_w, linear_b, hw_tile_max=128)
    jax.block_until_ready(logits2)
    assert jnp.allclose(logits2, ref, atol=2e-4, rtol=2e-4)

    # 3) Multi-block with ragged tail (HW=400, tile=128 -> masked last block),
    #    no wrapper-side padding pass.
    x_ragged = jax.random.normal(kx2, (2, 4, 20, 20), dtype=jnp.float32)
    logits3 = gwap_forward(x_ragged, linear_w, linear_b, hw_tile_max=128)
    jax.block_until_ready(logits3)
    assert jnp.allclose(logits3, gwap_reference(x_ragged, linear_w, linear_b),
                        atol=2e-4, rtol=2e-4)

    # 4) Ragged rows (N*C=10): two row blocks (megacore split) with a partial
    #    last row block, and a spatial extent that is not a multiple of 128.
    C5 = 5
    linear_w5 = jax.random.normal(klw, (K, C5), dtype=jnp.float32) * 0.1
    x_rows = jax.random.normal(kx3, (2, C5, 10, 10), dtype=jnp.float32)
    logits4 = gwap_forward(x_rows, linear_w5, linear_b)
    jax.block_until_ready(logits4)
    assert jnp.allclose(logits4, gwap_reference(x_rows, linear_w5, linear_b),
                        atol=2e-4, rtol=2e-4)

    # 5) bf16 activations: halves HBM bytes, accumulation stays in f32.
    x_bf16 = x.astype(jnp.bfloat16)
    logits5 = gwap_forward(x_bf16, linear_w, linear_b)
    jax.block_until_ready(logits5)
    ref5 = gwap_reference(x_bf16.astype(jnp.float32), linear_w, linear_b)
    assert jnp.allclose(logits5, ref5, atol=1e-3, rtol=1e-3)

    print("KERNEL_OK")
</pallas_src>

<mosaic_0001>
module attributes {stable_mosaic.version = 11 : i64} {
  func.func @kernel(%arg0: i32, %arg1: i32, %arg2: memref<8x256xf32, #tpu.memory_space<vmem>>, %arg3: memref<8x1xf32, #tpu.memory_space<vmem>>, %arg4: memref<8x128xf32, #tpu.memory_space<vmem>>, %arg5: memref<8x128xf32, #tpu.memory_space<vmem>>, %arg6: memref<8x128xf32, #tpu.memory_space<vmem>>) attributes {dimension_semantics = [#tpu.dimension_semantics<parallel>, #tpu.dimension_semantics<arbitrary>], iteration_bounds = array<i64: 1, 1>, scalar_prefetch = 0 : i64, scratch_operands = 3 : i64, tpu.core_type = #tpu.core_type<tc>, window_params = [{transform_indices = @transform_0, window_bounds = array<i64: 8, 256>}, {transform_indices = @transform_1, window_bounds = array<i64: 8, 1>}]} {
    %c0_i32 = arith.constant 0 : i32
    %0 = arith.cmpi eq, %arg1, %c0_i32 : i32
    %1 = arith.extui %0 : i1 to i32
    %c0_i32_0 = arith.constant 0 : i32
    %2 = arith.cmpi ne, %1, %c0_i32_0 : i32
    scf.if %2 {
      %cst_28 = arith.constant 0.000000e+00 : f32
      %59 = vector.broadcast %cst_28 : f32 to vector<8x128xf32>
      %c0_29 = arith.constant 0 : index
      %c0_30 = arith.constant 0 : index
      %60 = vector.load %arg4[%c0_29, %c0_30] : memref<8x128xf32, #tpu.memory_space<vmem>>, vector<8x128xf32>
      tpu.vector_store %arg4[%c0_29, %c0_30], %59 {strides = array<i32>} : memref<8x128xf32, #tpu.memory_space<vmem>>, vector<8x128xf32>,
      %cst_31 = arith.constant 0.000000e+00 : f32
      %61 = vector.broadcast %cst_31 : f32 to vector<8x128xf32>
      %c0_32 = arith.constant 0 : index
      %c0_33 = arith.constant 0 : index
      %62 = vector.load %arg5[%c0_32, %c0_33] : memref<8x128xf32, #tpu.memory_space<vmem>>, vector<8x128xf32>
      tpu.vector_store %arg5[%c0_32, %c0_33], %61 {strides = array<i32>} : memref<8x128xf32, #tpu.memory_space<vmem>>, vector<8x128xf32>,
      %cst_34 = arith.constant 0.000000e+00 : f32
      %63 = vector.broadcast %cst_34 : f32 to vector<8x128xf32>
      %c0_35 = arith.constant 0 : index
      %c0_36 = arith.constant 0 : index
      %64 = vector.load %arg6[%c0_35, %c0_36] : memref<8x128xf32, #tpu.memory_space<vmem>>, vector<8x128xf32>
      tpu.vector_store %arg6[%c0_35, %c0_36], %63 {strides = array<i32>} : memref<8x128xf32, #tpu.memory_space<vmem>>, vector<8x128xf32>,
    } else {
    }
    %c0 = arith.constant 0 : index
    %c0_1 = arith.constant 0 : index
    %3 = vector.load %arg2[%c0, %c0_1] : memref<8x256xf32, #tpu.memory_space<vmem>>, vector<8x256xf32>
    %cst = arith.constant 5.000000e-01 : f32
    %4 = vector.broadcast %cst : f32 to vector<8x256xf32>
    %5 = arith.mulf %4, %3 : vector<8x256xf32>
    %6 = math.tanh %5 : vector<8x256xf32>
    %cst_2 = arith.constant 5.000000e-01 : f32
    %7 = vector.broadcast %cst_2 : f32 to vector<8x256xf32>
    %8 = arith.mulf %7, %6 : vector<8x256xf32>
    %cst_3 = arith.constant 5.000000e-01 : f32
    %9 = vector.broadcast %cst_3 : f32 to vector<8x256xf32>
    %10 = arith.addf %9, %8 : vector<8x256xf32>
    %cst_4 = arith.constant 5.000000e-01 : f32
    %11 = vector.broadcast %cst_4 : f32 to vector<8x256xf32>
    %12 = arith.mulf %11, %6 : vector<8x256xf32>
    %cst_5 = arith.constant 1.98412701E-4 : f32
    %13 = vector.broadcast %cst_5 : f32 to vector<8x256xf32>
    %14 = arith.mulf %12, %13 : vector<8x256xf32>
    %cst_6 = arith.constant 0.00138888892 : f32
    %15 = vector.broadcast %cst_6 : f32 to vector<8x256xf32>
    %16 = arith.addf %15, %14 : vector<8x256xf32>
    %17 = arith.mulf %12, %16 : vector<8x256xf32>
    %cst_7 = arith.constant 0.00833333377 : f32
    %18 = vector.broadcast %cst_7 : f32 to vector<8x256xf32>
    %19 = arith.addf %18, %17 : vector<8x256xf32>
    %20 = arith.mulf %12, %19 : vector<8x256xf32>
    %cst_8 = arith.constant 0.0416666679 : f32
    %21 = vector.broadcast %cst_8 : f32 to vector<8x256xf32>
    %22 = arith.addf %21, %20 : vector<8x256xf32>
    %23 = arith.mulf %12, %22 : vector<8x256xf32>
    %cst_9 = arith.constant 0.166666672 : f32
    %24 = vector.broadcast %cst_9 : f32 to vector<8x256xf32>
    %25 = arith.addf %24, %23 : vector<8x256xf32>
    %26 = arith.mulf %12, %25 : vector<8x256xf32>
    %cst_10 = arith.constant 5.000000e-01 : f32
    %27 = vector.broadcast %cst_10 : f32 to vector<8x256xf32>
    %28 = arith.addf %27, %26 : vector<8x256xf32>
    %29 = arith.mulf %12, %28 : vector<8x256xf32>
    %cst_11 = arith.constant 1.000000e+00 : f32
    %30 = vector.broadcast %cst_11 : f32 to vector<8x256xf32>
    %31 = arith.addf %30, %29 : vector<8x256xf32>
    %32 = arith.mulf %12, %31 : vector<8x256xf32>
    %cst_12 = arith.constant 1.000000e+00 : f32
    %33 = vector.broadcast %cst_12 : f32 to vector<8x256xf32>
    %34 = arith.addf %33, %32 : vector<8x256xf32>
    %cst_13 = arith.constant 1.64872122 : f32
    %35 = vector.broadcast %cst_13 : f32 to vector<8x256xf32>
    %36 = arith.mulf %35, %34 : vector<8x256xf32>
    %37 = arith.mulf %10, %3 : vector<8x256xf32>
    %38 = vector.extract_strided_slice %36 {offsets = [0, 0], sizes = [8, 128], strides = [1, 1]} : vector<8x256xf32> to vector<8x128xf32>
    %39 = vector.extract_strided_slice %37 {offsets = [0, 0], sizes = [8, 128], strides = [1, 1]} : vector<8x256xf32> to vector<8x128xf32>
    %40 = vector.extract_strided_slice %3 {offsets = [0, 0], sizes = [8, 128], strides = [1, 1]} : vector<8x256xf32> to vector<8x128xf32>
    %41 = vector.extract_strided_slice %36 {offsets = [0, 128], sizes = [8, 128], strides = [1, 1]} : vector<8x256xf32> to vector<8x128xf32>
    %42 = arith.addf %38, %41 : vector<8x128xf32>
    %43 = vector.extract_strided_slice %37 {offsets = [0, 128], sizes = [8, 128], strides = [1, 1]} : vector<8x256xf32> to vector<8x128xf32>
    %44 = arith.addf %39, %43 : vector<8x128xf32>
    %45 = vector.extract_strided_slice %3 {offsets = [0, 128], sizes = [8, 128], strides = [1, 1]} : vector<8x256xf32> to vector<8x128xf32>
    %46 = arith.addf %40, %45 : vector<8x128xf32>
    %c0_14 = arith.constant 0 : index
    %c0_15 = arith.constant 0 : index
    %47 = vector.load %arg4[%c0_14, %c0_15] : memref<8x128xf32, #tpu.memory_space<vmem>>, vector<8x128xf32>
    %48 = arith.addf %47, %42 : vector<8x128xf32>
    %c0_16 = arith.constant 0 : index
    %c0_17 = arith.constant 0 : index
    %49 = vector.load %arg4[%c0_16, %c0_17] : memref<8x128xf32, #tpu.memory_space<vmem>>, vector<8x128xf32>
    tpu.vector_store %arg4[%c0_16, %c0_17], %48 {strides = array<i32>} : memref<8x128xf32, #tpu.memory_space<vmem>>, vector<8x128xf32>,
    %c0_18 = arith.constant 0 : index
    %c0_19 = arith.constant 0 : index
    %50 = vector.load %arg5[%c0_18, %c0_19] : memref<8x128xf32, #tpu.memory_space<vmem>>, vector<8x128xf32>
    %51 = arith.addf %50, %44 : vector<8x128xf32>
    %c0_20 = arith.constant 0 : index
    %c0_21 = arith.constant 0 : index
    %52 = vector.load %arg5[%c0_20, %c0_21] : memref<8x128xf32, #tpu.memory_space<vmem>>, vector<8x128xf32>
    tpu.vector_store %arg5[%c0_20, %c0_21], %51 {strides = array<i32>} : memref<8x128xf32, #tpu.memory_space<vmem>>, vector<8x128xf32>,
    %c0_22 = arith.constant 0 : index
    %c0_23 = arith.constant 0 : index
    %53 = vector.load %arg6[%c0_22, %c0_23] : memref<8x128xf32, #tpu.memory_space<vmem>>, vector<8x128xf32>
    %54 = arith.addf %53, %46 : vector<8x128xf32>
    %c0_24 = arith.constant 0 : index
    %c0_25 = arith.constant 0 : index
    %55 = vector.load %arg6[%c0_24, %c0_25] : memref<8x128xf32, #tpu.memory_space<vmem>>, vector<8x128xf32>
    tpu.vector_store %arg6[%c0_24, %c0_25], %54 {strides = array<i32>} : memref<8x128xf32, #tpu.memory_space<vmem>>, vector<8x128xf32>,
    %c0_i32_26 = arith.constant 0 : i32
    %56 = arith.cmpi eq, %arg1, %c0_i32_26 : i32
    %57 = arith.extui %56 : i1 to i32
    %c0_i32_27 = arith.constant 0 : i32
    %58 = arith.cmpi ne, %57, %c0_i32_27 : i32
    scf.if %58 {
      %c0_28 = arith.constant 0 : index
      %c0_29 = arith.constant 0 : index
      %59 = vector.load %arg4[%c0_28, %c0_29] : memref<8x128xf32, #tpu.memory_space<vmem>>, vector<8x128xf32>
      %cst_30 = arith.constant dense<0.000000e+00> : vector<8xf32>
      %60 = vector.multi_reduction <add>, %59, %cst_30 [1] : vector<8x128xf32> to vector<8xf32>
      %61 = vector.shape_cast %60 : vector<8xf32> to vector<8x1xf32>
      %c0_31 = arith.constant 0 : index
      %c0_32 = arith.constant 0 : index
      %62 = vector.load %arg5[%c0_31, %c0_32] : memref<8x128xf32, #tpu.memory_space<vmem>>, vector<8x128xf32>
      %cst_33 = arith.constant dense<0.000000e+00> : vector<8xf32>
      %63 = vector.multi_reduction <add>, %62, %cst_33 [1] : vector<8x128xf32> to vector<8xf32>
      %64 = vector.shape_cast %63 : vector<8xf32> to vector<8x1xf32>
      %c0_34 = arith.constant 0 : index
      %c0_35 = arith.constant 0 : index
      %65 = vector.load %arg6[%c0_34, %c0_35] : memref<8x128xf32, #tpu.memory_space<vmem>>, vector<8x128xf32>
      %cst_36 = arith.constant dense<0.000000e+00> : vector<8xf32>
      %66 = vector.multi_reduction <add>, %65, %cst_36 [1] : vector<8x128xf32> to vector<8xf32>
      %67 = vector.shape_cast %66 : vector<8xf32> to vector<8x1xf32>
      %68 = math.log %61 : vector<8x1xf32>
      %69 = arith.mulf %68, %67 : vector<8x1xf32>
      %70 = arith.subf %64, %69 : vector<8x1xf32>
      %c0_37 = arith.constant 0 : index
      %c0_38 = arith.constant 0 : index
      %71 = vector.load %arg3[%c0_37, %c0_38] : memref<8x1xf32, #tpu.memory_space<vmem>>, vector<8x1xf32>
      tpu.vector_store %arg3[%c0_37, %c0_38], %70 {strides = array<i32>} : memref<8x1xf32, #tpu.memory_space<vmem>>, vector<8x1xf32>,
    } else {
    }
    return
  }
  func.func @transform_0(%arg0: i32, %arg1: i32) -> (i32, i32) {
    %c0_i32 = arith.constant 0 : i32
    return %arg0, %arg1 : i32, i32
  }
  func.func @transform_1(%arg0: i32, %arg1: i32) -> (i32, i32) {
    %c0_i32 = arith.constant 0 : i32
    %c0_i32_0 = arith.constant 0 : i32
    return %arg0, %c0_i32 : i32, i32
  }
}

</mosaic_0001>

<llo_original>
// kernel: tpu_custom_call.1
$region0: #{tpu_custom_call.1}
  #allocation0 [shape = 'u32[]', space=smem, size = 0x4, offset = 0x4, fixed_abs, tag = 'smem constant byte address 0x4 - core index']
  #allocation1 [shape = 'u32[144,128]{1,0:T(1,128)}', space=vmem, size = 0x12000, scoped, tag = 'internal scratch']
  #allocation2 [shape = 'f32[8,128]{1,0:T(8,128)}', space=vmem, size = 0x1000, scoped, tag = 'scratch operand']
  #allocation3 [shape = 'f32[8,128]{1,0:T(8,128)}', space=vmem, size = 0x1000, scoped, tag = 'scratch operand']
  #allocation4 [shape = 'f32[8,128]{1,0:T(8,128)}', space=vmem, size = 0x1000, scoped, tag = 'scratch operand']
  %s0 = inlined_call_operand.hbm [shape: f32[8,256], index: 0, kind: input, shape index: {}]
  %s1 = inlined_call_operand.vmem [shape: f32[8,1], index: 1, kind: output, shape index: {}]
  %s2 = sld [smem:[#allocation0]]
  $region26: #{tpu_custom_call.1} parent=0
    _
  %s4 = ssub.s32 1, %s2
  %s5 = scalar_select 0, %s4, %s2
  $region1: #{tpu_custom_call.1} parent=0
    #allocation5 [shape = 'u8[8192]{0}', space=vmem, size = 0x2000, scoped, tag = 'input window, operand 0, single buffered']
    #allocation6 [shape = 's32[1]{0}', space=sflag, size = 0x4, scoped, tag = 'scoped memory for tpu_custom_call.1']
    %6 = vsyncpa [#allocation6], 0
    // Predicated region
    $region2: #{tpu_custom_call.1} parent=1 // pred_check
      _
    $region3: #{tpu_custom_call.1} parent=1 // pred_check_branch
      %8 = sbr.rel (0) target = $region5
    $region4: #{tpu_custom_call.1} parent=1 // pred_region
      %s10 = ssub.s32 256, 256
      %11 = vsyncadd [#allocation6], %s10
      %s13 = sshll.u32 [#allocation5], 4
      %s14 = int_to_ptr.vmem [resolvable:$true] %s13
      %16 = dma.hbm_to_vmem [thread:$0]  %s0, 256, %s14, [#allocation6]
    $region5: #{tpu_custom_call.1} parent=1 // pred_fallthru
      _
    // Predicated region
    $region6: #{tpu_custom_call.1} parent=1 // pred_check
      _
    $region7: #{tpu_custom_call.1} parent=1 // pred_check_branch
      %18 = sbr.rel (0) target = $region9
    $region8: #{tpu_custom_call.1} parent=1 // pred_region
      %19 = dma.done [#allocation6], 256
    $region9: #{tpu_custom_call.1} parent=1 // pred_fallthru
      _
    %p20 = scmp.eq.s32.totalorder 0, 0
    // Predicated region
    $region10: #{tpu_custom_call.1} parent=1 // pred_check
      %p21 = pneg %p20
    $region11: #{tpu_custom_call.1} parent=1 // pred_check_branch
      %23 = sbr.rel (%p21) target = $region13
    $region12: #{tpu_custom_call.1} parent=1 // pred_region
      %24 = vst [vmem:[#allocation2] sm:$0xff] 0.0
      %25 = vst [vmem:[#allocation3] sm:$0xff] 0.0
      %26 = vst [vmem:[#allocation4] sm:$0xff] 0.0
    $region13: #{tpu_custom_call.1} parent=1 // pred_fallthru
      _
    %v27 = vld [vmem:[#allocation5] sm:$0xff]
    %v28 = vld [vmem:[#allocation5 + $0x8] sm:$0xff]
    %v29 = vmul.f32 %v27, 0.5
    %v30 = vmul.f32 %v28, 0.5
    %v31 = vtanh.pop %v29
    %v32 = vtanh.pop %v30
    %v33 = vmul.f32 %v31, 0.5
    %v34 = vmul.f32 %v32, 0.5
    %v35 = vadd.f32 %v33, 0.5
    %v36 = vadd.f32 %v34, 0.5
    %v37 = vmul.f32 %v33, 0.0001984127
    %v38 = vmul.f32 %v34, 0.0001984127
    %v39 = vadd.f32 %v37, 0.0013888889
    %v40 = vadd.f32 %v38, 0.0013888889
    %v41 = vmul.f32 %v33, %v39
    %v42 = vmul.f32 %v34, %v40
    %v43 = vadd.f32 %v41, 0.008333334
    %v44 = vadd.f32 %v42, 0.008333334
    %v45 = vmul.f32 %v33, %v43
    %v46 = vmul.f32 %v34, %v44
    %v47 = vadd.f32 %v45, 0.041666668
    %v48 = vadd.f32 %v46, 0.041666668
    %v49 = vmul.f32 %v33, %v47
    %v50 = vmul.f32 %v34, %v48
    %v51 = vadd.f32 %v49, 0.16666667
    %v52 = vadd.f32 %v50, 0.16666667
    %v53 = vmul.f32 %v33, %v51
    %v54 = vmul.f32 %v34, %v52
    %v55 = vadd.f32 %v53, 0.5
    %v56 = vadd.f32 %v54, 0.5
    %v57 = vmul.f32 %v33, %v55
    %v58 = vmul.f32 %v34, %v56
    %v59 = vadd.f32 %v57, 1.0
    %v60 = vadd.f32 %v58, 1.0
    %v61 = vmul.f32 %v33, %v59
    %v62 = vmul.f32 %v34, %v60
    %v63 = vadd.f32 %v61, 1.0
    %v64 = vadd.f32 %v62, 1.0
    %v65 = vmul.f32 %v63, 1.6487212
    %v66 = vmul.f32 %v64, 1.6487212
    %v67 = vmul.f32 %v35, %v27
    %v68 = vmul.f32 %v36, %v28
    %v69 = vadd.f32 %v65, %v66
    %v70 = vadd.f32 %v67, %v68
    %v71 = vadd.f32 %v27, %v28
    %v72 = vld [vmem:[#allocation2] sm:$0xff]
    %v73 = vadd.f32 %v72, %v69
    %74 = vst [vmem:[#allocation2] sm:$0xff] %v73
    %v75 = vld [vmem:[#allocation3] sm:$0xff]
    %v76 = vadd.f32 %v75, %v70
    %77 = vst [vmem:[#allocation3] sm:$0xff] %v76
    %v78 = vld [vmem:[#allocation4] sm:$0xff]
    %v79 = vadd.f32 %v78, %v71
    %80 = vst [vmem:[#allocation4] sm:$0xff] %v79
    // Predicated region
    $region14: #{tpu_custom_call.1} parent=1 // pred_check
      %p81 = pneg %p20
    $region15: #{tpu_custom_call.1} parent=1 // pred_check_branch
      %83 = sbr.rel (%p81) target = $region17
    $region16: #{tpu_custom_call.1} parent=1 // pred_region
      %v84 = vld [vmem:[#allocation2] sm:$0xff]
      %85 = vadd.xlane.f32.xlu0 %v84
      %v86 = vpop.xlane.xlu0 %85
      %v87 = vld [vmem:[#allocation3] sm:$0xff]
      %88 = vadd.xlane.f32.xlu0 %v87
      %v89 = vpop.xlane.xlu0 %88
      %v90 = vld [vmem:[#allocation4] sm:$0xff]
      %91 = vadd.xlane.f32.xlu0 %v90
      %v92 = vpop.xlane.xlu0 %91
      %v93 = vlog2.pop %v86
      %v94 = vmul.f32 %v93, 0.6931472
      %v95 = vmul.f32 %v94, %v92
      %v96 = vsub.f32 %v89, %v95
      %vm97 = vcmask 7168
      %98 = vst.msk [vmem:[%s1] sm:$0xff] %vm97, %v96
    $region17: #{tpu_custom_call.1} parent=1 // pred_fallthru
      _
    // Predicated region
    $region18: #{tpu_custom_call.1} parent=1 // pred_check
      _
    $region19: #{tpu_custom_call.1} parent=1 // pred_check_branch
      %100 = sbr.rel (0) target = $region21
    $region20: #{tpu_custom_call.1} parent=1 // pred_region
      _
    $region21: #{tpu_custom_call.1} parent=1 // pred_fallthru
      _
    // Predicated region
    $region22: #{tpu_custom_call.1} parent=1 // pred_check
      _
    $region23: #{tpu_custom_call.1} parent=1 // pred_check_branch
      %102 = sbr.rel (0) target = $region25
    $region24: #{tpu_custom_call.1} parent=1 // pred_region
      _
    $region25: #{tpu_custom_call.1} parent=1 // pred_fallthru
      _
    %103 = vsyncpa [#allocation6], 1

</llo_original>
